<compile_context>
chip_gen: v7x
topology: tpu7x:2x2x1
jax: 0.10.0
libtpu: 0.0.40
codegen_flags: <defaults>
</compile_context>

<pallas_src>
import jax
import jax.numpy as jnp
from jax.experimental import pallas as pl
from jax.experimental.pallas import tpu as pltpu


def pe_add_kernel(x_ref, pe_ref, o_ref):
    # x_ref : (TILE_B, TILE_S, C) tile of x
    # pe_ref: (TILE_S, C)         matching rows of the expanded embedding table
    # o_ref : (TILE_B, TILE_S, C) output tile
    o_ref[...] = (x_ref[...] + pe_ref[...][None, :, :]).astype(o_ref.dtype)


def _plan_tiles(B, LP, C, itemsizes, *, requested_tile_s=2048,
                budget_bytes=12 * 1024 * 1024):
    """Pick (tile_s, tile_b, s_tiles, b_tiles).

    tile_s only needs to be a sublane multiple (partial edge blocks are masked
    by Pallas with a cdiv grid); tile_b grows to use the remaining double-
    buffered VMEM budget so per-step overhead is amortized.
    """
    x_is, pe_is, out_is = itemsizes
    # Sublane multiple: 8 for 4-byte dtypes, 16 for 2-byte, 32 for 1-byte.
    sublane = max(32 // s for s in itemsizes)
    # Double-buffered bytes per sequence row for each stream.
    bytes_per_row_xo = 2 * C * (x_is + out_is)   # x in + out, per batch row
    bytes_per_row_pe = 2 * C * pe_is             # pe (batch independent)
    max_rows = budget_bytes // max(bytes_per_row_xo + bytes_per_row_pe, 1)

    if LP <= max(max_rows, 1) or LP <= sublane:
        # Whole sequence per step (full-extent block is always layout-legal).
        tile_s = LP
    else:
        tile_s = min(int(requested_tile_s), (max_rows // sublane) * sublane)
        tile_s = max(tile_s, sublane)
    s_tiles = pl.cdiv(LP, tile_s)

    # Grow the batch block with whatever budget is left.
    left = budget_bytes - tile_s * bytes_per_row_pe
    tile_b = max(1, left // max(tile_s * bytes_per_row_xo, 1))
    tile_b = int(min(tile_b, B))
    b_tiles = pl.cdiv(B, tile_b)
    return int(tile_s), tile_b, int(s_tiles), int(b_tiles)


def positional_encoding(x, pe, P, *, requested_tile_s=2048,
                        vmem_budget_bytes=12 * 1024 * 1024):
    """x: (B, L*P, C), pe: (L, C) -> x + repeat_interleave(pe, P, 0)[None]."""
    B, LP, C = x.shape
    L, C_pe = pe.shape
    if C != C_pe:
        raise ValueError("channel mismatch between x and position embeddings")
    if LP != L * P:
        raise ValueError(
            "The expanded position embeddings do not match the sequence length."
        )

    # Tiny table expansion done once outside the kernel (L*P*C elements).
    pe_exp = jnp.repeat(pe, P, axis=0)  # (LP, C)

    out_dtype = jnp.result_type(x.dtype, pe.dtype)  # matches torch add promotion
    itemsizes = (
        jnp.dtype(x.dtype).itemsize,
        jnp.dtype(pe_exp.dtype).itemsize,
        jnp.dtype(out_dtype).itemsize,
    )
    tile_s, tile_b, s_tiles, b_tiles = _plan_tiles(
        B, LP, C, itemsizes,
        requested_tile_s=requested_tile_s, budget_bytes=vmem_budget_bytes,
    )

    if s_tiles == 1:
        # pe_exp fully VMEM-resident (constant block index -> fetched once).
        # 1-D grid over batch tiles keeps the megacore-sharded leading axis big.
        grid = (b_tiles,)
        in_specs = [
            pl.BlockSpec((tile_b, LP, C), lambda b: (b, 0, 0)),
            pl.BlockSpec((LP, C), lambda b: (0, 0)),
        ]
        out_spec = pl.BlockSpec((tile_b, LP, C), lambda b: (b, 0, 0))
        dims = ("parallel",)
    else:
        # Sequence axis slow, batch axis fast: the pe block index is unchanged
        # across the inner batch sweep, so Pallas skips re-fetching it and the
        # expanded table is read from HBM only once in total.
        grid = (s_tiles, b_tiles)
        in_specs = [
            pl.BlockSpec((tile_b, tile_s, C), lambda s, b: (b, s, 0)),
            pl.BlockSpec((tile_s, C), lambda s, b: (s, 0)),
        ]
        out_spec = pl.BlockSpec((tile_b, tile_s, C), lambda s, b: (b, s, 0))
        dims = ("parallel", "parallel")

    return pl.pallas_call(
        pe_add_kernel,
        out_shape=jax.ShapeDtypeStruct((B, LP, C), out_dtype),
        grid=grid,
        in_specs=in_specs,
        out_specs=out_spec,
        compiler_params=pltpu.CompilerParams(dimension_semantics=dims),
    )(x, pe_exp)


def _reference(x, pe, P):
    pe_expanded = jnp.repeat(pe, P, axis=0)          # repeat_interleave(P, dim=0)
    return x + pe_expanded[None, :, :]               # broadcast over batch


if __name__ == "__main__":
    key = jax.random.PRNGKey(0)

    # Test 1: small lane-dense shapes (B=2, L=4, P=8, C=128 -> x is (2, 32, 128)).
    # Whole sequence fits -> resident-pe path, 1-D batch grid.
    B, L, P, C = 2, 4, 8, 128
    k_x, k_pe, key = jax.random.split(key, 3)
    x = jax.random.normal(k_x, (B, L * P, C), dtype=jnp.float32)
    pe = jax.random.normal(k_pe, (L, C), dtype=jnp.float32)   # torch.randn(L, C) analogue

    out = jax.block_until_ready(positional_encoding(x, pe, P))
    ref = _reference(x, pe, P)
    assert out.shape == (B, L * P, C)
    assert out.dtype == jnp.result_type(x.dtype, pe.dtype)
    assert jnp.allclose(out, ref, atol=1e-6, rtol=1e-6)

    # Test 2: exercise the streaming (seq-slow, batch-fast) path with a partial
    # edge block by forcing a tiny VMEM budget (B=2, L=5, P=8, C=128 -> LP=40,
    # tile_s=16 -> 3 seq tiles, last one masked).
    B2, L2, P2, C2 = 2, 5, 8, 128
    k_x2, k_pe2, key = jax.random.split(key, 3)
    x2 = jax.random.normal(k_x2, (B2, L2 * P2, C2), dtype=jnp.float32)
    pe2 = jax.random.normal(k_pe2, (L2, C2), dtype=jnp.float32)

    out2 = jax.block_until_ready(
        positional_encoding(x2, pe2, P2, vmem_budget_bytes=16 * 3072)
    )
    ref2 = _reference(x2, pe2, P2)
    assert out2.shape == (B2, L2 * P2, C2)
    assert jnp.allclose(out2, ref2, atol=1e-6, rtol=1e-6)

    print("KERNEL_OK")
</pallas_src>

<mosaic_0001>
module attributes {stable_mosaic.version = 11 : i64} {
  func.func @pe_add_kernel(%arg0: i32, %arg1: memref<2x32x128xf32, #tpu.memory_space<vmem>>, %arg2: memref<32x128xf32, #tpu.memory_space<vmem>>, %arg3: memref<2x32x128xf32, #tpu.memory_space<vmem>>) attributes {dimension_semantics = [#tpu.dimension_semantics<parallel>], iteration_bounds = array<i64: 1>, scalar_prefetch = 0 : i64, scratch_operands = 0 : i64, tpu.core_type = #tpu.core_type<tc>, window_params = [{transform_indices = @transform_0, window_bounds = array<i64: 2, 32, 128>}, {pipeline_mode = #tpu.pipeline_mode<synchronous>, transform_indices = @transform_1, window_bounds = array<i64: 32, 128>}, {transform_indices = @transform_2, window_bounds = array<i64: 2, 32, 128>}]} {
    %c0 = arith.constant 0 : index
    %c0_0 = arith.constant 0 : index
    %c0_1 = arith.constant 0 : index
    %0 = vector.load %arg1[%c0, %c0_0, %c0_1] : memref<2x32x128xf32, #tpu.memory_space<vmem>>, vector<2x32x128xf32>
    %c0_2 = arith.constant 0 : index
    %c0_3 = arith.constant 0 : index
    %1 = vector.load %arg2[%c0_2, %c0_3] : memref<32x128xf32, #tpu.memory_space<vmem>>, vector<32x128xf32>
    %2 = vector.shape_cast %1 : vector<32x128xf32> to vector<1x32x128xf32>
    %3 = vector.broadcast %2 : vector<1x32x128xf32> to vector<2x32x128xf32>
    %4 = arith.addf %0, %3 : vector<2x32x128xf32>
    %c0_4 = arith.constant 0 : index
    %c0_5 = arith.constant 0 : index
    %c0_6 = arith.constant 0 : index
    %5 = vector.load %arg3[%c0_4, %c0_5, %c0_6] : memref<2x32x128xf32, #tpu.memory_space<vmem>>, vector<2x32x128xf32>
    tpu.vector_store %arg3[%c0_4, %c0_5, %c0_6], %4 {strides = array<i32>} : memref<2x32x128xf32, #tpu.memory_space<vmem>>, vector<2x32x128xf32>,
    return
  }
  func.func @transform_0(%arg0: i32) -> (i32, i32, i32) {
    %c0_i32 = arith.constant 0 : i32
    %c0_i32_0 = arith.constant 0 : i32
    %c0_i32_1 = arith.constant 0 : i32
    return %arg0, %c0_i32, %c0_i32_0 : i32, i32, i32
  }
  func.func @transform_1(%arg0: i32) -> (i32, i32) {
    %c0_i32 = arith.constant 0 : i32
    %c0_i32_0 = arith.constant 0 : i32
    %c0_i32_1 = arith.constant 0 : i32
    return %c0_i32, %c0_i32_0 : i32, i32
  }
  func.func @transform_2(%arg0: i32) -> (i32, i32, i32) {
    %c0_i32 = arith.constant 0 : i32
    %c0_i32_0 = arith.constant 0 : i32
    %c0_i32_1 = arith.constant 0 : i32
    return %arg0, %c0_i32, %c0_i32_0 : i32, i32, i32
  }
}

</mosaic_0001>

<llo_original>
// kernel: tpu_custom_call.1
$region0: #{tpu_custom_call.1}
  #allocation0 [shape = 'u32[]', space=smem, size = 0x4, offset = 0x4, fixed_abs, tag = 'smem constant byte address 0x4 - core index']
  #allocation1 [shape = 'u32[144,128]{1,0:T(1,128)}', space=vmem, size = 0x12000, scoped, tag = 'internal scratch']
  %s0 = inlined_call_operand.hbm [shape: f32[2,32,128], index: 0, kind: input, shape index: {}]
  %s1 = inlined_call_operand.hbm [shape: f32[32,128], index: 1, kind: input, shape index: {}]
  %s2 = inlined_call_operand.hbm [shape: f32[2,32,128], index: 2, kind: output, shape index: {}]
  %s3 = sld [smem:[#allocation0]]
  $region26: #{tpu_custom_call.1} parent=0
    _
  %s5 = ssub.s32 1, %s3
  %s6 = scalar_select 0, %s5, %s3
  $region1: #{tpu_custom_call.1} parent=0
    #allocation2 [shape = 'u8[32768]{0}', space=vmem, size = 0x8000, scoped, tag = 'input window, operand 0, single buffered']
    #allocation3 [shape = 's32[1]{0}', space=sflag, size = 0x4, scoped, tag = 'scoped memory for tpu_custom_call.1']
    #allocation4 [shape = 's32[1]{0}', space=sflag, size = 0x4, scoped, tag = 'scoped memory for tpu_custom_call.1']
    #allocation5 [shape = 'u8[16384]{0}', space=vmem, size = 0x4000, scoped, tag = 'input window, operand 1, single buffered']
    #allocation6 [shape = 's32[1]{0}', space=sflag, size = 0x4, scoped, tag = 'scoped memory for tpu_custom_call.1']
    #allocation7 [shape = 'u8[32768]{0}', space=vmem, size = 0x8000, scoped, tag = 'output window, operand 0, single buffered']
    %7 = vsyncpa [#allocation3], 0
    %8 = vsyncpa [#allocation6], 0
    %9 = vsyncpa [#allocation4], 0
    // Predicated region
    $region2: #{tpu_custom_call.1} parent=1 // pred_check
      _
    $region3: #{tpu_custom_call.1} parent=1 // pred_check_branch
      %11 = sbr.rel (0) target = $region5
    $region4: #{tpu_custom_call.1} parent=1 // pred_region
      %s13 = ssub.s32 1024, 1024
      %14 = vsyncadd [#allocation3], %s13
      %s15 = sshll.u32 [#allocation2], 4
      %s16 = int_to_ptr.vmem [resolvable:$true] %s15
      %21 = dma.hbm_to_vmem [thread:$0]  %s0, 1024, %s16, [#allocation3], 128, 128, 8
    $region5: #{tpu_custom_call.1} parent=1 // pred_fallthru
      _
    // Predicated region
    $region6: #{tpu_custom_call.1} parent=1 // pred_check
      _
    $region7: #{tpu_custom_call.1} parent=1 // pred_check_branch
      %23 = sbr.rel (0) target = $region9
    $region8: #{tpu_custom_call.1} parent=1 // pred_region
      %s25 = ssub.s32 512, 512
      %26 = vsyncadd [#allocation6], %s25
      %s27 = sshll.u32 [#allocation5], 4
      %s28 = int_to_ptr.vmem [resolvable:$true] %s27
      %33 = dma.hbm_to_vmem [thread:$0]  %s1, 512, %s28, [#allocation6], 128, 128, 8
    $region9: #{tpu_custom_call.1} parent=1 // pred_fallthru
      _
    // Predicated region
    $region10: #{tpu_custom_call.1} parent=1 // pred_check
      _
    $region11: #{tpu_custom_call.1} parent=1 // pred_check_branch
      %35 = sbr.rel (0) target = $region13
    $region12: #{tpu_custom_call.1} parent=1 // pred_region
      %36 = dma.done [#allocation3], 1024
    $region13: #{tpu_custom_call.1} parent=1 // pred_fallthru
      _
    // Predicated region
    $region14: #{tpu_custom_call.1} parent=1 // pred_check
      _
    $region15: #{tpu_custom_call.1} parent=1 // pred_check_branch
      %38 = sbr.rel (0) target = $region17
    $region16: #{tpu_custom_call.1} parent=1 // pred_region
      %39 = dma.done [#allocation6], 512
    $region17: #{tpu_custom_call.1} parent=1 // pred_fallthru
      _
    %v40 = vld [vmem:[#allocation2] sm:$0xff]
    %v41 = vld [vmem:[#allocation2 + $0x8] sm:$0xff]
    %v42 = vld [vmem:[#allocation2 + $0x10] sm:$0xff]
    %v43 = vld [vmem:[#allocation2 + $0x18] sm:$0xff]
    %v44 = vld [vmem:[#allocation2 + $0x20] sm:$0xff]
    %v45 = vld [vmem:[#allocation2 + $0x28] sm:$0xff]
    %v46 = vld [vmem:[#allocation2 + $0x30] sm:$0xff]
    %v47 = vld [vmem:[#allocation2 + $0x38] sm:$0xff]
    %v48 = vld [vmem:[#allocation5] sm:$0xff]
    %v49 = vld [vmem:[#allocation5 + $0x8] sm:$0xff]
    %v50 = vld [vmem:[#allocation5 + $0x10] sm:$0xff]
    %v51 = vld [vmem:[#allocation5 + $0x18] sm:$0xff]
    %v52 = vadd.f32 %v40, %v48
    %v53 = vadd.f32 %v41, %v49
    %v54 = vadd.f32 %v42, %v50
    %v55 = vadd.f32 %v43, %v51
    %v56 = vadd.f32 %v44, %v48
    %v57 = vadd.f32 %v45, %v49
    %v58 = vadd.f32 %v46, %v50
    %v59 = vadd.f32 %v47, %v51
    %60 = vst [vmem:[#allocation7] sm:$0xff] %v52
    %61 = vst [vmem:[#allocation7 + $0x8] sm:$0xff] %v53
    %62 = vst [vmem:[#allocation7 + $0x10] sm:$0xff] %v54
    %63 = vst [vmem:[#allocation7 + $0x18] sm:$0xff] %v55
    %64 = vst [vmem:[#allocation7 + $0x20] sm:$0xff] %v56
    %65 = vst [vmem:[#allocation7 + $0x28] sm:$0xff] %v57
    %66 = vst [vmem:[#allocation7 + $0x30] sm:$0xff] %v58
    %67 = vst [vmem:[#allocation7 + $0x38] sm:$0xff] %v59
    // Predicated region
    $region18: #{tpu_custom_call.1} parent=1 // pred_check
      _
    $region19: #{tpu_custom_call.1} parent=1 // pred_check_branch
      %69 = sbr.rel (0) target = $region21
    $region20: #{tpu_custom_call.1} parent=1 // pred_region
      %s71 = ssub.s32 1024, 1024
      %72 = vsyncadd [#allocation4], %s71
      %s73 = sshll.u32 [#allocation7], 4
      %s74 = int_to_ptr.vmem [resolvable:$true] %s73
      %79 = dma.vmem_to_hbm [thread:$0]  %s74, 1024, %s2, [#allocation4], 128, 128, 8
    $region21: #{tpu_custom_call.1} parent=1 // pred_fallthru
      _
    // Predicated region
    $region22: #{tpu_custom_call.1} parent=1 // pred_check
      _
    $region23: #{tpu_custom_call.1} parent=1 // pred_check_branch
      %81 = sbr.rel (0) target = $region25
    $region24: #{tpu_custom_call.1} parent=1 // pred_region
      %82 = dma.done [#allocation4], 1024
    $region25: #{tpu_custom_call.1} parent=1 // pred_fallthru
      _
    %83 = vsyncpa [#allocation3], 1
    %84 = vsyncpa [#allocation6], 1
    %85 = vsyncpa [#allocation4], 1

</llo_original>
